<compile_context>
chip_gen: v5e
topology: v5e:2x2
jax: 0.10.0
libtpu: 0.0.40
codegen_flags: <defaults>
</compile_context>

<pallas_src>
from functools import partial

import jax
import jax.numpy as jnp
from jax import lax
from jax.experimental import pallas as pl
from jax.experimental.pallas import tpu as pltpu


def _pick_tile(dim, candidates):
    """Largest candidate that divides `dim`, else the full dim."""
    for c in candidates:
        if dim >= c and dim % c == 0:
            return c
    return dim


# ------------------------------ Linear kernel ------------------------------ #
def _linear_kernel(x_ref, w_ref, b_ref, o_ref, acc_ref):
    # x: (tm, tk), w: (tn, tk)  [PyTorch (out_features, in_features) layout]
    @pl.when(pl.program_id(2) == 0)
    def _():
        acc_ref[...] = jnp.zeros(acc_ref.shape, dtype=acc_ref.dtype)

    acc_ref[...] += lax.dot_general(
        x_ref[...], w_ref[...],
        dimension_numbers=(((1,), (1,)), ((), ())),   # contract K with K, no w.T
        preferred_element_type=jnp.float32)

    @pl.when(pl.program_id(2) == pl.num_programs(2) - 1)
    def _():
        o_ref[...] = (acc_ref[...] + b_ref[...]).astype(o_ref.dtype)


def linear(x, w, b):
    """y = x @ w.T + b  with x:(M,K), w:(N,K) (PyTorch layout), b:(N,)."""
    M, K = x.shape
    N = w.shape[0]
    tm = _pick_tile(M, (256, 128))
    tn = _pick_tile(N, (256, 128))
    tk = _pick_tile(K, (512, 256, 128))
    cost = pl.CostEstimate(
        flops=2 * M * N * K,
        transcendentals=0,
        bytes_accessed=4 * (M * K + N * K + M * N + N))
    return pl.pallas_call(
        _linear_kernel,
        out_shape=jax.ShapeDtypeStruct((M, N), x.dtype),
        grid_spec=pltpu.PrefetchScalarGridSpec(
            num_scalar_prefetch=0,
            grid=(M // tm, N // tn, K // tk),
            in_specs=[
                pl.BlockSpec((tm, tk), lambda i, j, k: (i, k)),
                pl.BlockSpec((tn, tk), lambda i, j, k: (j, k)),
                pl.BlockSpec((1, tn), lambda i, j, k: (0, j)),
            ],
            out_specs=pl.BlockSpec((tm, tn), lambda i, j, k: (i, j)),
            scratch_shapes=[pltpu.VMEM((tm, tn), jnp.float32)]),
        compiler_params=pltpu.CompilerParams(
            dimension_semantics=("parallel", "parallel", "arbitrary")),
        cost_estimate=cost,
    )(x, w, b.reshape(1, N))


# ---------------------- Flash attention (all heads/step) ------------------- #
def _flash_attn_kernel(q_ref, k_ref, v_ref, o_ref, m_ref, l_ref, acc_ref,
                       *, num_heads, head_dim, scale):
    # q_ref: (tq, C), k_ref/v_ref: (tkv, C), o_ref: (tq, C)   (C = H*D, lane-dense)
    ki = pl.program_id(2)

    @pl.when(ki == 0)
    def _():
        m_ref[...] = jnp.full(m_ref.shape, -jnp.inf, dtype=m_ref.dtype)
        l_ref[...] = jnp.zeros(l_ref.shape, dtype=l_ref.dtype)
        acc_ref[...] = jnp.zeros(acc_ref.shape, dtype=acc_ref.dtype)

    for h in range(num_heads):                       # static unroll over heads
        lo = h * head_dim
        q_h = q_ref[:, lo:lo + head_dim] * scale     # (tq, D), q = q * scale
        k_h = k_ref[:, lo:lo + head_dim]             # (tkv, D)
        v_h = v_ref[:, lo:lo + head_dim]             # (tkv, D)

        # scores in fp32; contract last dims directly (no k.T relayout)
        s = lax.dot_general(q_h, k_h,
                            dimension_numbers=(((1,), (1,)), ((), ())),
                            preferred_element_type=jnp.float32)   # (tq, tkv)

        m_prev = m_ref[h]                            # (tq, 1)
        l_prev = l_ref[h]
        m_new = jnp.maximum(m_prev, jnp.max(s, axis=-1, keepdims=True))
        alpha = jnp.exp(m_prev - m_new)              # fp32
        p = jnp.exp(s - m_new)                       # fp32 softmax numerator
        l_ref[h] = alpha * l_prev + jnp.sum(p, axis=-1, keepdims=True)
        m_ref[h] = m_new
        acc_ref[h] = alpha * acc_ref[h] + jnp.dot(
            p.astype(v_h.dtype), v_h, preferred_element_type=jnp.float32)

    @pl.when(ki == pl.num_programs(2) - 1)
    def _():
        for h in range(num_heads):
            lo = h * head_dim
            inv_l = pl.reciprocal(l_ref[h], approx=True)     # EUP vrcp, ~free
            o_ref[:, lo:lo + head_dim] = (acc_ref[h] * inv_l).astype(o_ref.dtype)


def flash_attention(qkv, *, num_heads, scale):
    """qkv: (B*N, 3C) packed projection (channels ordered q|k|v, head-major).

    Returns (B_, N, C) with heads already folded back into the channel dim,
    i.e. exactly `x.transpose(1, 2).reshape(B, N, C)` of the PyTorch module.
    """
    BN, C3 = qkv.shape
    C = C3 // 3
    D = C // num_heads
    return _flash_attention_impl(qkv, num_heads, D, float(scale))


def _flash_attention_impl(qkv_flat, num_heads, head_dim, scale):
    # Shapes are re-derived by the caller (attention_forward) which knows B, N.
    raise NotImplementedError  # replaced below; kept for readability


def _flash_attention_call(qkv_flat, B, N, C, num_heads, scale):
    D = C // num_heads
    tq = _pick_tile(N, (256, 128))
    tkv = _pick_tile(N, (256, 128))
    nq, nkv = N // tq, N // tkv

    if C % 128 == 0:
        # Index q/k/v straight out of the packed (B, N, 3C) buffer: the column
        # block index (0/1/2) selects the q/k/v slab — no HBM split/transpose.
        qkv3 = qkv_flat.reshape(B, N, 3 * C)
        q_in = k_in = v_in = qkv3
        q_spec = pl.BlockSpec((None, tq, C), lambda b, qi, ki: (b, qi, 0))
        k_spec = pl.BlockSpec((None, tkv, C), lambda b, qi, ki: (b, ki, 1))
        v_spec = pl.BlockSpec((None, tkv, C), lambda b, qi, ki: (b, ki, 2))
    else:
        # Fallback for C not lane-aligned: contiguous column slices in XLA
        # (still avoids the 5-D head transpose of the original code).
        qkv4 = qkv_flat.reshape(B, N, 3, C)
        q_in, k_in, v_in = qkv4[:, :, 0], qkv4[:, :, 1], qkv4[:, :, 2]
        q_spec = pl.BlockSpec((None, tq, C), lambda b, qi, ki: (b, qi, 0))
        k_spec = pl.BlockSpec((None, tkv, C), lambda b, qi, ki: (b, ki, 0))
        v_spec = pl.BlockSpec((None, tkv, C), lambda b, qi, ki: (b, ki, 0))

    o_spec = pl.BlockSpec((None, tq, C), lambda b, qi, ki: (b, qi, 0))

    cost = pl.CostEstimate(
        flops=4 * B * num_heads * N * N * D,
        transcendentals=B * num_heads * N * N,
        bytes_accessed=4 * B * N * C * (2 + 2 * nq))

    kernel = partial(_flash_attn_kernel, num_heads=num_heads, head_dim=D,
                     scale=scale)
    return pl.pallas_call(
        kernel,
        out_shape=jax.ShapeDtypeStruct((B, N, C), qkv_flat.dtype),
        grid_spec=pltpu.PrefetchScalarGridSpec(
            num_scalar_prefetch=0,
            grid=(B, nq, nkv),
            in_specs=[q_spec, k_spec, v_spec],
            out_specs=o_spec,
            scratch_shapes=[
                pltpu.VMEM((num_heads, tq, 1), jnp.float32),   # running max m
                pltpu.VMEM((num_heads, tq, 1), jnp.float32),   # running sum l
                pltpu.VMEM((num_heads, tq, D), jnp.float32),   # output accum
            ]),
        compiler_params=pltpu.CompilerParams(
            dimension_semantics=("parallel", "parallel", "arbitrary")),
        cost_estimate=cost,
    )(q_in, k_in, v_in)


# ------------------------------- Full forward ------------------------------ #
def attention_forward(x, w_qkv, b_qkv, w_proj, b_proj, *, num_heads):
    """Attention.forward for qkv_bias=False, qk_norm=False, dropouts=0."""
    B, N, C = x.shape
    assert C % num_heads == 0
    D = C // num_heads
    scale = D ** (-0.5)

    # qkv = self.qkv(x): weights stay in PyTorch (out, in) layout (no .T copy).
    qkv = linear(x.reshape(B * N, C), w_qkv, b_qkv)          # (B*N, 3C)

    # q/k/v split, per-head flash attention, fp32 softmax, and head re-fold are
    # all fused into one kernel; output comes back lane-dense as (B, N, C).
    o = _flash_attention_call(qkv, B, N, C, num_heads, float(scale))

    # x = self.proj(x)
    out = linear(o.reshape(B * N, C), w_proj, b_proj)
    return out.reshape(B, N, C)


# -------------------------- Pure-JAX reference ------------------------------ #
def _reference_forward(x, w_qkv, b_qkv, w_proj, b_proj, num_heads):
    B, N, C = x.shape
    D = C // num_heads
    qkv = x @ w_qkv.T + b_qkv
    qkv = qkv.reshape(B, N, 3, num_heads, D).transpose(2, 0, 3, 1, 4)
    q, k, v = qkv[0], qkv[1], qkv[2]
    q = q * (D ** (-0.5))
    attn = jnp.einsum("bhqd,bhkd->bhqk", q, k)
    attn = jax.nn.softmax(attn.astype(jnp.float32), axis=-1).astype(x.dtype)
    o = jnp.einsum("bhqk,bhkd->bhqd", attn, v)
    o = o.transpose(0, 2, 1, 3).reshape(B, N, C)
    return o @ w_proj.T + b_proj


# ----------------------------------- Main ----------------------------------- #
if __name__ == "__main__":
    # Small shapes consistent with the module: B=2, seq N=8, dim C=128, heads=4.
    B, N, C, H = 2, 8, 128, 4

    key = jax.random.PRNGKey(0)
    kx, kq, kp, kb = jax.random.split(key, 4)

    x = jax.random.normal(kx, (B, N, C), dtype=jnp.float32)

    # PyTorch weight layout: (out_features, in_features).
    w_qkv = 0.02 * jax.random.normal(kq, (3 * C, C), dtype=jnp.float32)
    b_qkv = jnp.zeros((3 * C,), dtype=jnp.float32)   # qkv_bias=False -> zero bias
    w_proj = 0.02 * jax.random.normal(kp, (C, C), dtype=jnp.float32)
    b_proj = 0.02 * jax.random.normal(kb, (C,), dtype=jnp.float32)

    out = attention_forward(x, w_qkv, b_qkv, w_proj, b_proj, num_heads=H)
    out = jax.block_until_ready(out)
    assert out.shape == (B, N, C)

    ref = _reference_forward(x, w_qkv, b_qkv, w_proj, b_proj, H)
    max_err = float(jnp.max(jnp.abs(out - ref)))
    assert max_err < 1e-2, f"mismatch vs reference: max_err={max_err}"

    print("KERNEL_OK")
</pallas_src>

<mosaic_0001>
module attributes {stable_mosaic.version = 11 : i64} {
  func.func @_linear_kernel(%arg0: i32, %arg1: i32, %arg2: i32, %arg3: memref<16x128xf32, #tpu.memory_space<vmem>>, %arg4: memref<128x128xf32, #tpu.memory_space<vmem>>, %arg5: memref<1x128xf32, #tpu.memory_space<vmem>>, %arg6: memref<16x128xf32, #tpu.memory_space<vmem>>, %arg7: memref<16x128xf32, #tpu.memory_space<vmem>>) attributes {dimension_semantics = [#tpu.dimension_semantics<parallel>, #tpu.dimension_semantics<parallel>, #tpu.dimension_semantics<arbitrary>], iteration_bounds = array<i64: 1, 3, 1>, scalar_prefetch = 0 : i64, scratch_operands = 1 : i64, tpu.core_type = #tpu.core_type<tc>, window_params = [{transform_indices = @transform_0, window_bounds = array<i64: 16, 128>}, {transform_indices = @transform_1, window_bounds = array<i64: 128, 128>}, {transform_indices = @transform_2, window_bounds = array<i64: 1, 128>}, {transform_indices = @transform_3, window_bounds = array<i64: 16, 128>}]} {
    %c0_i32 = arith.constant 0 : i32
    %0 = arith.cmpi eq, %arg2, %c0_i32 : i32
    %1 = arith.extui %0 : i1 to i32
    %c0_i32_0 = arith.constant 0 : i32
    %2 = arith.cmpi ne, %1, %c0_i32_0 : i32
    scf.if %2 {
      %cst_10 = arith.constant 0.000000e+00 : f32
      %12 = vector.broadcast %cst_10 : f32 to vector<16x128xf32>
      %c0_11 = arith.constant 0 : index
      %c0_12 = arith.constant 0 : index
      %13 = vector.load %arg7[%c0_11, %c0_12] : memref<16x128xf32, #tpu.memory_space<vmem>>, vector<16x128xf32>
      tpu.vector_store %arg7[%c0_11, %c0_12], %12 {strides = array<i32>} : memref<16x128xf32, #tpu.memory_space<vmem>>, vector<16x128xf32>,
    } else {
    }
    %c0 = arith.constant 0 : index
    %c0_1 = arith.constant 0 : index
    %3 = vector.load %arg7[%c0, %c0_1] : memref<16x128xf32, #tpu.memory_space<vmem>>, vector<16x128xf32>
    %c0_2 = arith.constant 0 : index
    %c0_3 = arith.constant 0 : index
    %4 = vector.load %arg3[%c0_2, %c0_3] : memref<16x128xf32, #tpu.memory_space<vmem>>, vector<16x128xf32>
    %c0_4 = arith.constant 0 : index
    %c0_5 = arith.constant 0 : index
    %5 = vector.load %arg4[%c0_4, %c0_5] : memref<128x128xf32, #tpu.memory_space<vmem>>, vector<128x128xf32>
    %cst = arith.constant dense<0.000000e+00> : vector<16x128xf32>
    %6 = tpu.matmul %4, %5, %cst {dimension_numbers = #tpu.dot_dimension_numbers<[1], [1], [0], [0], [0, 0, 1, 0], [], []>} : vector<16x128xf32>, vector<128x128xf32>, vector<16x128xf32> -> vector<16x128xf32>
    %7 = arith.addf %3, %6 : vector<16x128xf32>
    %c0_6 = arith.constant 0 : index
    %c0_7 = arith.constant 0 : index
    %8 = vector.load %arg7[%c0_6, %c0_7] : memref<16x128xf32, #tpu.memory_space<vmem>>, vector<16x128xf32>
    tpu.vector_store %arg7[%c0_6, %c0_7], %7 {strides = array<i32>} : memref<16x128xf32, #tpu.memory_space<vmem>>, vector<16x128xf32>,
    %c0_i32_8 = arith.constant 0 : i32
    %9 = arith.cmpi eq, %arg2, %c0_i32_8 : i32
    %10 = arith.extui %9 : i1 to i32
    %c0_i32_9 = arith.constant 0 : i32
    %11 = arith.cmpi ne, %10, %c0_i32_9 : i32
    scf.if %11 {
      %c0_10 = arith.constant 0 : index
      %c0_11 = arith.constant 0 : index
      %12 = vector.load %arg7[%c0_10, %c0_11] : memref<16x128xf32, #tpu.memory_space<vmem>>, vector<16x128xf32>
      %c0_12 = arith.constant 0 : index
      %c0_13 = arith.constant 0 : index
      %13 = vector.load %arg5[%c0_12, %c0_13] : memref<1x128xf32, #tpu.memory_space<vmem>>, vector<1x128xf32>
      %14 = vector.broadcast %13 : vector<1x128xf32> to vector<16x128xf32>
      %15 = arith.addf %12, %14 : vector<16x128xf32>
      %c0_14 = arith.constant 0 : index
      %c0_15 = arith.constant 0 : index
      %16 = vector.load %arg6[%c0_14, %c0_15] : memref<16x128xf32, #tpu.memory_space<vmem>>, vector<16x128xf32>
      tpu.vector_store %arg6[%c0_14, %c0_15], %15 {strides = array<i32>} : memref<16x128xf32, #tpu.memory_space<vmem>>, vector<16x128xf32>,
    } else {
    }
    return
  }
  func.func @transform_0(%arg0: i32, %arg1: i32, %arg2: i32) -> (i32, i32) {
    %c0_i32 = arith.constant 0 : i32
    return %arg0, %arg2 : i32, i32
  }
  func.func @transform_1(%arg0: i32, %arg1: i32, %arg2: i32) -> (i32, i32) {
    %c0_i32 = arith.constant 0 : i32
    return %arg1, %arg2 : i32, i32
  }
  func.func @transform_2(%arg0: i32, %arg1: i32, %arg2: i32) -> (i32, i32) {
    %c0_i32 = arith.constant 0 : i32
    %c0_i32_0 = arith.constant 0 : i32
    return %c0_i32, %arg1 : i32, i32
  }
  func.func @transform_3(%arg0: i32, %arg1: i32, %arg2: i32) -> (i32, i32) {
    %c0_i32 = arith.constant 0 : i32
    return %arg0, %arg1 : i32, i32
  }
}

</mosaic_0001>

<llo_original>
// kernel: tpu_custom_call.1
$region0: #{tpu_custom_call.1}
  #allocation0 [shape = 'u32[]', space=smem, size = 0x4, offset = 0x4, fixed_abs, tag = 'smem constant byte address 0x4 - core index']
  #allocation1 [shape = 'u32[72,128]{1,0:T(1,128)}', space=vmem, size = 0x9000, scoped, tag = 'internal scratch']
  #allocation2 [shape = 'f32[16,128]{1,0:T(8,128)}', space=vmem, size = 0x2000, scoped, tag = 'scratch operand']
  %s0 = inlined_call_operand.hbm [shape: f32[16,128], index: 0, kind: input, shape index: {}]
  %s1 = inlined_call_operand.hbm [shape: f32[384,128], index: 1, kind: input, shape index: {}]
  %s2 = inlined_call_operand.hbm [shape: f32[1,384], index: 2, kind: input, shape index: {}]
  %s3 = inlined_call_operand.hbm [shape: f32[16,384], index: 3, kind: output, shape index: {}]
  %s4 = sld [smem:[#allocation0]]
  $region65: #{tpu_custom_call.1} parent=0
    _
  %s6 = ssub.s32 1, %s4
  %s7 = scalar_select 0, %s6, %s4
  $region1: #{tpu_custom_call.1} parent=0
    #allocation3 [shape = 'u8[8192]{0}', space=vmem, size = 0x2000, scoped, tag = 'input window, operand 0, single buffered']
    #allocation4 [shape = 's32[2]{0}', space=sflag, size = 0x8, scoped, tag = 'scoped memory for tpu_custom_call.1']
    #allocation5 [shape = 's32[2]{0}', space=sflag, size = 0x8, scoped, tag = 'scoped memory for tpu_custom_call.1']
    #allocation6 [shape = 'u8[131072]{0}', space=vmem, size = 0x20000, scoped, tag = 'input window, operand 1']
    #allocation7 [shape = 's32[2]{0}', space=sflag, size = 0x8, scoped, tag = 'scoped memory for tpu_custom_call.1']
    #allocation8 [shape = 'u8[1024]{0}', space=vmem, size = 0x400, scoped, tag = 'input window, operand 2']
    #allocation9 [shape = 'u8[16384]{0}', space=vmem, size = 0x4000, scoped, tag = 'output window, operand 0']
    %8 = vsyncpa [#allocation4], 0
    %9 = vsyncpa [#allocation7], 0
    %s10 = scalar_lea.sflag [#allocation7], 1
    %11 = vsyncpa %s10, 0
    %12 = vsyncpa [#allocation5], 0
    %s13 = scalar_lea.sflag [#allocation5], 1
    %14 = vsyncpa %s13, 0
    loop: start=0, step=1, limit=5
    $region2: #{tpu_custom_call.1} parent=1 // loop_pre_header
      _
    $region3: #{tpu_custom_call.1} parent=1 // loop_header
      %s16 = sphi 0, %s20
      %p17 = scmp.ge.s32.totalorder %s16, 5
      %s23 = sphi 0, %s42
      %s24 = sphi 0, %s38
      %s25 = sphi 0, %s34
      %s26 = sphi 0, %s23
      %s27 = sphi 0, %s24
      %s28 = sphi 0, %s25
      %s29 = sphi 0, %s26
      %s30 = sphi 0, %s27
      %s31 = sphi 0, %s28
      %s47 = sphi 0, %s49
      %s50 = sphi 0, %s47
      %s51 = sphi 0, %s50
      %s67 = sphi 0, %s51
      %s75 = sphi 0, %s77
      %s78 = sphi 0, %s75
      %s79 = sphi 0, %s78
      %s95 = sphi 0, %s79
      %s101 = sphi 0, %s103
      %s104 = sphi 0, %s101
      %s105 = sphi 0, %s104
      %s121 = sphi 0, %s105
      %s129 = sphi 0, %s131
      %s132 = sphi 0, %s129
      %s133 = sphi 0, %s132
      %s149 = sphi 0, %s133
    $region4: #{tpu_custom_call.1} parent=1 // loop_header_branch
      %19 = sbr.rel (%p17) target = $region8
    $region5: #{tpu_custom_call.1} parent=1 // loop_body
      %s21 = ssub.s32 %s16, 1
      %s22 = ssub.s32 %s16, 2
      %s32 = sadd.s32 1, %s25
      %p33 = scmp.ge.s32.totalorder %s32, 1
      %s34 = scalar_select %p33, 0, %s32
      %s35 = sadd.s32 1, %s24
      %s36 = scalar_select %p33, %s35, %s24
      %p37 = scmp.ge.s32.totalorder %s36, 3
      %s38 = scalar_select %p37, 0, %s36
      %s39 = sadd.s32 1, %s23
      %s40 = scalar_select %p37, %s39, %s23
      %p41 = scmp.ge.s32.totalorder %s40, 1
      %s42 = scalar_select %p41, 0, %s40
      %s43 = ssub.s32 %s23, %s42
      %s44 = ssub.s32 %s25, %s34
      %s45 = sor.u32 %s43, %s44
      %p46 = scmp.eq.s32.totalorder %s45, 0
      %s48 = sadd.s32 %s47, 1
      %s49 = scalar_select %p46, %s47, %s48
      %p52 = pneg %p46
      %p53 = scmp.eq.s32.totalorder %s16, 2
      %p54 = por %p52, %p53
      %p55 = scmp.ne.s32.totalorder %s47, %s50
      %p56 = scmp.eq.s32.totalorder %s16, 0
      %p57 = por %p55, %p56
      %p58 = scmp.ne.s32.totalorder %s47, %s50
      %p59 = scmp.eq.s32.totalorder %s21, 2
      %p60 = por %p58, %p59
      %p61 = scmp.ne.s32.totalorder %s50, %s51
      %p62 = scmp.eq.s32.totalorder %s21, 0
      %p63 = por %p61, %p62
      %p64 = scmp.ne.s32.totalorder %s50, %s51
      %p65 = scmp.eq.s32.totalorder %s22, 2
      %p66 = por %p64, %p65
      %p68 = scmp.ne.s32.totalorder %s51, %s67
      %p69 = scmp.eq.s32.totalorder %s22, 0
      %p70 = por %p68, %p69
      %s71 = ssub.s32 %s24, %s38
      %s72 = ssub.s32 %s25, %s34
      %s73 = sor.u32 %s71, %s72
      %p74 = scmp.eq.s32.totalorder %s73, 0
      %s76 = sadd.s32 %s75, 1
      %s77 = scalar_select %p74, %s75, %s76
      %p80 = pneg %p74
      %p81 = scmp.eq.s32.totalorder %s16, 2
      %p82 = por %p80, %p81
      %p83 = scmp.ne.s32.totalorder %s75, %s78
      %p84 = scmp.eq.s32.totalorder %s16, 0
      %p85 = por %p83, %p84
      %p86 = scmp.ne.s32.totalorder %s75, %s78
      %p87 = scmp.eq.s32.totalorder %s21, 2
      %p88 = por %p86, %p87
      %p89 = scmp.ne.s32.totalorder %s78, %s79
      %p90 = scmp.eq.s32.totalorder %s21, 0
      %p91 = por %p89, %p90
      %p92 = scmp.ne.s32.totalorder %s78, %s79
      %p93 = scmp.eq.s32.totalorder %s22, 2
      %p94 = por %p92, %p93
      %p96 = scmp.ne.s32.totalorder %s79, %s95
      %p97 = scmp.eq.s32.totalorder %s22, 0
      %p98 = por %p96, %p97
      %s99 = ssub.s32 %s24, %s38
      %p100 = scmp.eq.s32.totalorder %s99, 0
      %s102 = sadd.s32 %s101, 1
      %s103 = scalar_select %p100, %s101, %s102
      %p106 = pneg %p100
      %p107 = scmp.eq.s32.totalorder %s16, 2
      %p108 = por %p106, %p107
      %p109 = scmp.ne.s32.totalorder %s101, %s104
      %p110 = scmp.eq.s32.totalorder %s16, 0
      %p111 = por %p109, %p110
      %p112 = scmp.ne.s32.totalorder %s101, %s104
      %p113 = scmp.eq.s32.totalorder %s21, 2
      %p114 = por %p112, %p113
      %p115 = scmp.ne.s32.totalorder %s104, %s105
      %p116 = scmp.eq.s32.totalorder %s21, 0
      %p117 = por %p115, %p116
      %p118 = scmp.ne.s32.totalorder %s104, %s105
      %p119 = scmp.eq.s32.totalorder %s22, 2
      %p120 = por %p118, %p119
      %p122 = scmp.ne.s32.totalorder %s105, %s121
      %p123 = scmp.eq.s32.totalorder %s22, 0
      %p124 = por %p122, %p123
      %s125 = ssub.s32 %s23, %s42
      %s126 = ssub.s32 %s24, %s38
      %s127 = sor.u32 %s125, %s126
      %p128 = scmp.eq.s32.totalorder %s127, 0
      %s130 = sadd.s32 %s129, 1
      %s131 = scalar_select %p128, %s129, %s130
      %p134 = pneg %p128
      %p135 = scmp.eq.s32.totalorder %s16, 2
      %p136 = por %p134, %p135
      %p137 = scmp.ne.s32.totalorder %s129, %s132
      %p138 = scmp.eq.s32.totalorder %s16, 0
      %p139 = por %p137, %p138
      %p140 = scmp.ne.s32.totalorder %s129, %s132
      %p141 = scmp.eq.s32.totalorder %s21, 2
      %p142 = por %p140, %p141
      %p143 = scmp.ne.s32.totalorder %s132, %s133
      %p144 = scmp.eq.s32.totalorder %s21, 0
      %p145 = por %p143, %p144
      %p146 = scmp.ne.s32.totalorder %s132, %s133
      %p147 = scmp.eq.s32.totalorder %s22, 2
      %p148 = por %p146, %p147
      %p150 = scmp.ne.s32.totalorder %s133, %s149
      %p151 = scmp.eq.s32.totalorder %s22, 0
      %p152 = por %p150, %p151
      %p153 = scmp.le.s32.totalorder 1, %s16
      %p154 = scmp.lt.s32.totalorder %s16, 4
      %p155 = pnand %p153, %p154
      %p156 = pneg %p155
      // Predicated region
      $region9: #{tpu_custom_call.1} parent=5 // pred_check
        _
      $region10: #{tpu_custom_call.1} parent=5 // pred_check_branch
        %158 = sbr.rel (%p155) target = $region12
      $region11: #{tpu_custom_call.1} parent=5 // pred_region
        %s159 = ssub.s32 %s16, 1
        // Predicated region
        $region13: #{tpu_custom_call.1} parent=11 // pred_check
          %p160 = pneg %p63
        $region14: #{tpu_custom_call.1} parent=11 // pred_check_branch
          %162 = sbr.rel (%p160) target = $region16
        $region15: #{tpu_custom_call.1} parent=11 // pred_region
          %s163 = smul.u32 2, %s26
          %165 = vsyncadd [#allocation4], 0
          %s166 = sadd.s32 %s28, %s163
          %s167 = smul.addr %s166, 8
          %s168 = scalar_lea.hbm %s0, %s167
          %s169 = sshll.u32 %s168, 4
          %s170 = int_to_ptr.hbm [resolvable:$true] %s169
          %s171 = sshll.u32 [#allocation3], 4
          %s172 = int_to_ptr.vmem [resolvable:$true] %s171
          %177 = dma.hbm_to_vmem [thread:$0]  %s170, 256, %s172, [#allocation4], 128, 128, 8
        $region16: #{tpu_custom_call.1} parent=11 // pred_fallthru
          _
      $region12: #{tpu_custom_call.1} parent=5 // pred_fallthru
        _
      %p178 = scmp.lt.s32.totalorder %s16, 3
      // Predicated region
      $region17: #{tpu_custom_call.1} parent=5 // pred_check
        %p179 = pneg %p178
      $region18: #{tpu_custom_call.1} parent=5 // pred_check_branch
        %181 = sbr.rel (%p179) target = $region20
      $region19: #{tpu_custom_call.1} parent=5 // pred_region
        // Predicated region
        $region21: #{tpu_custom_call.1} parent=19 // pred_check
          %p182 = pneg %p85
        $region22: #{tpu_custom_call.1} parent=19 // pred_check_branch
          %184 = sbr.rel (%p182) target = $region24
        $region23: #{tpu_custom_call.1} parent=19 // pred_region
          %s185 = sand.u32 %s16, 1
          %s186 = scalar_lea.sflag [#allocation7], %s185
          %s187 = sand.u32 %s75, 1
          %s188 = smul.addr %s187, 128
          %s189 = scalar_lea.vmem [#allocation6], %s188
          %s190 = smul.u32 16, %s24
          %192 = vsyncadd %s186, 0
          %s193 = sadd.s32 %s25, %s190
          %s194 = smul.addr %s193, 8
          %s195 = scalar_lea.hbm %s1, %s194
          %s196 = sshll.u32 %s195, 4
          %s197 = int_to_ptr.hbm [resolvable:$true] %s196
          %s198 = sshll.u32 %s189, 4
          %s199 = int_to_ptr.vmem [resolvable:$true] %s198
          %204 = dma.hbm_to_vmem [thread:$0]  %s197, 2048, %s199, %s186, 128, 128, 8
        $region24: #{tpu_custom_call.1} parent=19 // pred_fallthru
          _
        // Predicated region
        $region25: #{tpu_custom_call.1} parent=19 // pred_check
          %p205 = pneg %p111
        $region26: #{tpu_custom_call.1} parent=19 // pred_check_branch
          %207 = sbr.rel (%p205) target = $region28
        $region27: #{tpu_custom_call.1} parent=19 // pred_region
          %s208 = sand.u32 %s16, 1
          %s209 = scalar_lea.sflag [#allocation7], %s208
          %s210 = sand.u32 %s101, 1
          %s211 = scalar_lea.vmem [#allocation8], %s210
          %213 = vsyncadd %s209, 0
          %s214 = scalar_lea.hbm %s2, %s24
          %s216 = sshll.u32 %s214, 4
          %s217 = int_to_ptr.hbm [resolvable:$true] %s216
          %s218 = sshll.u32 %s211, 4
          %s219 = int_to_ptr.vmem [resolvable:$true] %s218
          %221 = dma.hbm_to_vmem [thread:$0]  %s217, 16, %s219, %s209
        $region28: #{tpu_custom_call.1} parent=19 // pred_fallthru
          _
      $region20: #{tpu_custom_call.1} parent=5 // pred_fallthru
        _
      %p222 = scmp.le.s32.totalorder 1, %s16
      %p223 = scmp.lt.s32.totalorder %s16, 4
      %p224 = pnand %p222, %p223
      %p225 = pneg %p224
      // Predicated region
      $region29: #{tpu_custom_call.1} parent=5 // pred_check
        _
      $region30: #{tpu_custom_call.1} parent=5 // pred_check_branch
        %227 = sbr.rel (%p224) target = $region32
      $region31: #{tpu_custom_call.1} parent=5 // pred_region
        %s228 = ssub.s32 %s16, 1
        // Predicated region
        $region33: #{tpu_custom_call.1} parent=31 // pred_check
          %p229 = pneg %p63
        $region34: #{tpu_custom_call.1} parent=31 // pred_check_branch
          %231 = sbr.rel (%p229) target = $region36
        $region35: #{tpu_custom_call.1} parent=31 // pred_region
          %233 = dma.done [#allocation4], 256
        $region36: #{tpu_custom_call.1} parent=31 // pred_fallthru
          _
        %s234 = sand.u32 %s21, 1
        %s235 = scalar_lea.sflag [#allocation7], %s234
        %s236 = sand.u32 %s78, 1
        %s237 = smul.addr %s236, 128
        %s238 = scalar_lea.vmem [#allocation6], %s237
        // Predicated region
        $region37: #{tpu_custom_call.1} parent=31 // pred_check
          %p239 = pneg %p91
        $region38: #{tpu_custom_call.1} parent=31 // pred_check_branch
          %241 = sbr.rel (%p239) target = $region40
        $region39: #{tpu_custom_call.1} parent=31 // pred_region
          %243 = dma.done %s235, 2048
        $region40: #{tpu_custom_call.1} parent=31 // pred_fallthru
          _
        %s244 = sand.u32 %s21, 1
        %s245 = scalar_lea.sflag [#allocation7], %s244
        %s246 = sand.u32 %s104, 1
        %s247 = scalar_lea.vmem [#allocation8], %s246
        // Predicated region
        $region41: #{tpu_custom_call.1} parent=31 // pred_check
          %p248 = pneg %p117
        $region42: #{tpu_custom_call.1} parent=31 // pred_check_branch
          %250 = sbr.rel (%p248) target = $region44
        $region43: #{tpu_custom_call.1} parent=31 // pred_region
          %252 = dma.done %s245, 16
        $region44: #{tpu_custom_call.1} parent=31 // pred_fallthru
          _
        %p253 = pneg %p63
        %p254 = pneg %p60
        %s255 = sand.u32 %s21, 1
        %s256 = scalar_lea.sflag [#allocation7], %s255
        %s257 = sand.u32 %s78, 1
        %s258 = smul.addr %s257, 128
        %s259 = scalar_lea.vmem [#allocation6], %s258
        %p260 = pneg %p91
        %p261 = pneg %p88
        %s262 = sand.u32 %s21, 1
        %s263 = scalar_lea.sflag [#allocation7], %s262
        %s264 = sand.u32 %s104, 1
        %s265 = scalar_lea.vmem [#allocation8], %s264
        %p266 = pneg %p117
        %p267 = pneg %p114
        %p268 = pneg %p145
        %p269 = pneg %p142
        %s270 = sand.u32 %s132, 1
        %s271 = scalar_lea.sflag [#allocation5], %s270
        %s272 = sand.u32 %s132, 1
        %s273 = smul.addr %s272, 16
        %s274 = scalar_lea.vmem [#allocation9], %s273
        %s275 = smul.u32 2, %s26
        %s276 = smul.u32 16, %s27
        %s277 = smul.u32 2, %s26
        %p278 = scmp.eq.s32.totalorder %s28, 0
        // Predicated region
        $region45: #{tpu_custom_call.1} parent=31 // pred_check
          %p279 = pneg %p278
        $region46: #{tpu_custom_call.1} parent=31 // pred_check_branch
          %281 = sbr.rel (%p279) target = $region48
        $region47: #{tpu_custom_call.1} parent=31 // pred_region
          %282 = vst [vmem:[#allocation2] sm:$0xff] 0.0
          %283 = vst [vmem:[#allocation2 + $0x8] sm:$0xff] 0.0
        $region48: #{tpu_custom_call.1} parent=31 // pred_fallthru
          _
        %v284 = vld [vmem:[#allocation2] sm:$0xff]
        %v285 = vld [vmem:[#allocation2 + $0x8] sm:$0xff]
        %v286 = vld [vmem:[#allocation3] sm:$0xff]
        %v287 = vld [vmem:[#allocation3 + $0x8] sm:$0xff]
        %v288 = vld [vmem:[%s238] sm:$0xff]
        %v289 = vld [vmem:[%s238 + $0x8] sm:$0xff]
        %v290 = vld [vmem:[%s238 + $0x10] sm:$0xff]
        %v291 = vld [vmem:[%s238 + $0x18] sm:$0xff]
        %v292 = vld [vmem:[%s238 + $0x20] sm:$0xff]
        %v293 = vld [vmem:[%s238 + $0x28] sm:$0xff]
        %v294 = vld [vmem:[%s238 + $0x30] sm:$0xff]
        %v295 = vld [vmem:[%s238 + $0x38] sm:$0xff]
        %v296 = vld [vmem:[%s238 + $0x40] sm:$0xff]
        %v297 = vld [vmem:[%s238 + $0x48] sm:$0xff]
        %v298 = vld [vmem:[%s238 + $0x50] sm:$0xff]
        %v299 = vld [vmem:[%s238 + $0x58] sm:$0xff]
        %v300 = vld [vmem:[%s238 + $0x60] sm:$0xff]
        %v301 = vld [vmem:[%s238 + $0x68] sm:$0xff]
        %v302 = vld [vmem:[%s238 + $0x70] sm:$0xff]
        %v303 = vld [vmem:[%s238 + $0x78] sm:$0xff]
        %304 = vmatpush.xpose.msra.mxu0 %v303
        %305 = vmatpush.xpose.msra.mxu0 %v302
        %306 = vmatpush.xpose.msra.mxu0 %v301
        %307 = vmatpush.xpose.msra.mxu0 %v300
        %308 = vmatpush.xpose.msra.mxu0 %v299
        %309 = vmatpush.xpose.msra.mxu0 %v298
        %310 = vmatpush.xpose.msra.mxu0 %v297
        %311 = vmatpush.xpose.msra.mxu0 %v296
        %312 = vmatpush.xpose.msra.mxu0 %v295
        %313 = vmatpush.xpose.msra.mxu0 %v294
        %314 = vmatpush.xpose.msra.mxu0 %v293
        %315 = vmatpush.xpose.msra.mxu0 %v292
        %316 = vmatpush.xpose.msra.mxu0 %v291
        %317 = vmatpush.xpose.msra.mxu0 %v290
        %318 = vmatpush.xpose.msra.mxu0 %v289
        %319 = vmatpush.xpose.msra.mxu0 %v288
        %320 = vmatmul.f32.gmra.mxu0 %v286
        %v321 = vpop.f32.mrf.mxu0
        %v322 = vadd.f32 0.0, %v321
        %323 = vmatmul.f32.gmra.mxu0 %v287
        %v324 = vpop.f32.mrf.mxu0
        %v325 = vadd.f32 0.0, %v324
        %326 = vdwg.mxu0
        %v327 = vadd.f32 %v284, %v322
        %v328 = vadd.f32 %v285, %v325
        %329 = vst [vmem:[#allocation2] sm:$0xff] %v327
        %330 = vst [vmem:[#allocation2 + $0x8] sm:$0xff] %v328
        // Predicated region
        $region49: #{tpu_custom_call.1} parent=31 // pred_check
          %p331 = pneg %p278
        $region50: #{tpu_custom_call.1} parent=31 // pred_check_branch
          %333 = sbr.rel (%p331) target = $region52
        $region51: #{tpu_custom_call.1} parent=31 // pred_region
          %v334 = vld [vmem:[#allocation2] sm:$0xff]
          %v335 = vld [vmem:[#allocation2 + $0x8] sm:$0xff]
          %v336 = vld [vmem:[%s247] sm:$0x1]
          %v338 = vperm.slane %v336, 0
          %v340 = vadd.f32 %v334, %v338
          %v341 = vadd.f32 %v335, %v338
          %342 = vst [vmem:[%s274] sm:$0xff] %v340
          %343 = vst [vmem:[%s274 + $0x8] sm:$0xff] %v341
        $region52: #{tpu_custom_call.1} parent=31 // pred_fallthru
          _
        %s344 = sand.u32 %s132, 1
        %s345 = scalar_lea.sflag [#allocation5], %s344
        %s346 = sand.u32 %s132, 1
        %s347 = smul.addr %s346, 16
        %s348 = scalar_lea.vmem [#allocation9], %s347
        // Predicated region
        $region53: #{tpu_custom_call.1} parent=31 // pred_check
          %p349 = pneg %p142
        $region54: #{tpu_custom_call.1} parent=31 // pred_check_branch
          %351 = sbr.rel (%p349) target = $region56
        $region55: #{tpu_custom_call.1} parent=31 // pred_region
          %s352 = smul.u32 2, %s26
          %354 = vsyncadd %s345, 0
          %s355 = smul.addr %s352, 3
          %s356 = sadd.s32 %s27, %s355
          %s357 = smul.addr %s356, 8
          %s358 = scalar_lea.hbm %s3, %s357
          %s359 = sshll.u32 %s348, 4
          %s360 = int_to_ptr.vmem [resolvable:$true] %s359
          %s361 = sshll.u32 %s358, 4
          %s362 = int_to_ptr.hbm [resolvable:$true] %s361
          %367 = dma.vmem_to_hbm [thread:$0]  %s360, 256, %s362, %s345, 128, 384, 8
        $region56: #{tpu_custom_call.1} parent=31 // pred_fallthru
          _
      $region32: #{tpu_custom_call.1} parent=5 // pred_fallthru
        _
      %p368 = scmp.le.s32.totalorder 2, %s16
      // Predicated region
      $region57: #{tpu_custom_call.1} parent=5 // pred_check
        %p369 = pneg %p368
      $region58: #{tpu_custom_call.1} parent=5 // pred_check_branch
        %371 = sbr.rel (%p369) target = $region60
      $region59: #{tpu_custom_call.1} parent=5 // pred_region
        %s372 = ssub.s32 %s16, 2
        // Predicated region
        $region61: #{tpu_custom_call.1} parent=59 // pred_check
          %p373 = pneg %p148
        $region62: #{tpu_custom_call.1} parent=59 // pred_check_branch
          %375 = sbr.rel (%p373) target = $region64
        $region63: #{tpu_custom_call.1} parent=59 // pred_region
          %s376 = sand.u32 %s133, 1
          %s377 = scalar_lea.sflag [#allocation5], %s376
          %s378 = sand.u32 %s133, 1
          %s379 = smul.addr %s378, 16
          %s380 = scalar_lea.vmem [#allocation9], %s379
          %382 = dma.done %s377, 256
        $region64: #{tpu_custom_call.1} parent=59 // pred_fallthru
          _
      $region60: #{tpu_custom_call.1} parent=5 // pred_fallthru
        _
    $region6: #{tpu_custom_call.1} parent=1 // loop_footer
      %s20 = sadd.s32 1, %s16
    $region7: #{tpu_custom_call.1} parent=1 // loop_footer_branch
      %15 = sbr.rel target = $region3
    $region8: #{tpu_custom_call.1} parent=1 // loop_exit
      _
    %383 = vsyncpa [#allocation4], 1
    %s384 = scalar_lea.sflag [#allocation4], 1
    %385 = vsyncpa %s384, 1
    %386 = vsyncpa [#allocation7], 1
    %s387 = scalar_lea.sflag [#allocation7], 1
    %388 = vsyncpa %s387, 1
    %389 = vsyncpa [#allocation5], 1
    %s390 = scalar_lea.sflag [#allocation5], 1
    %391 = vsyncpa %s390, 1

</llo_original>
